<compile_context>
chip_gen: v6e
topology: v6e:2x2x1
jax: 0.10.0
libtpu: 0.0.40
codegen_flags: <defaults>
</compile_context>

<pallas_src>
import functools

import jax
import jax.numpy as jnp
from jax import lax
from jax.experimental import pallas as pl
from jax.experimental.pallas import tpu as pltpu

_MIB = 1024 * 1024


def _vmem_capacity_bytes():
    """Per-core VMEM capacity; conservative (v7x, 64 MiB) fallback."""
    try:
        info = pltpu.get_tpu_info()
        cap = int(getattr(info, "vmem_capacity_bytes", 0))
        if cap > 0:
            return cap
    except Exception:
        pass
    return 64 * _MIB


def _normalize_w_kernel(w_ref, wn_ref, *, s):
    """One-shot: column-L2-normalize a tile of W and fold in the scale s."""
    w = w_ref[...].astype(jnp.float32)
    ss = jnp.sum(w * w, axis=0, keepdims=True)
    # 1 / max(||w||, 1e-12) == rsqrt(max(||w||^2, 1e-24))    (EUP, cheap)
    inv = lax.rsqrt(jnp.maximum(ss, 1e-24))
    wn_ref[...] = (w * (inv * s)).astype(wn_ref.dtype)


def _am_softmax_kernel(x_ref, wn_ref, o_ref, *, compute_dtype):
    """Row tile x class tile: L2-normalize rows of x, matmul with (W_n * s)."""
    x = x_ref[...].astype(jnp.float32)
    ss = jnp.sum(x * x, axis=1, keepdims=True)
    inv = lax.rsqrt(jnp.maximum(ss, 1e-24))        # 1 / max(||x||, 1e-12)
    xn = (x * inv).astype(compute_dtype)
    # NOTE: for a ragged last row block the padded rows may hold garbage
    # (possibly inf/NaN after normalization); each output row depends only on
    # its own input row, and those rows are out-of-bounds -> masked on store.
    costh = jnp.dot(xn, wn_ref[...].astype(compute_dtype),
                    preferred_element_type=jnp.float32)
    o_ref[...] = costh.astype(o_ref.dtype)


def _tile_bytes(tm, C, tn, w_itemsize, out_itemsize):
    return (2 * tm * C * 4                 # double-buffered x tiles (f32)
            + 2 * C * tn * w_itemsize      # double-buffered normalized-W tiles
            + 2 * tm * tn * out_itemsize   # double-buffered output tiles
            + tm * tn * 4 + tm * C * 4)    # in-kernel f32 intermediates


def _choose_tm(M, C, tn, w_itemsize, out_itemsize, budget):
    # Output-dtype sublane packing sets the row-tile granularity:
    # 8 rows for f32 outputs, 16 for bf16, 32 for 8-bit.
    row_align = 8 * max(1, 4 // max(1, out_itemsize))
    if M <= row_align:
        return max(int(M), 1)          # single full-dim row block
    tm = 1024                          # 512-1024 rows amortize per-step overhead
    while tm > row_align and _tile_bytes(tm, C, tn, w_itemsize, out_itemsize) > budget:
        tm //= 2
    while tm > row_align and pl.cdiv(M, tm) < 2:   # keep both v7x TCs busy
        tm //= 2
    return max(tm, row_align)


def am_softmax_forward(x, W, s=30.0, *, tm=None, tn=None,
                       compute_dtype=jnp.float32, out_dtype=jnp.float32):
    """x: (B, N, C), W: (C, n_classes) -> (B, N, n_classes) in out_dtype."""
    B, N, C = x.shape
    C_w, n_classes = W.shape
    assert C == C_w
    M = B * N

    # Class tiling: keep the full class dim as a single lane block when small
    # (no padding -> no inflated HBM writes, masked vst is fine since we are
    # HBM-bound); tile by 512 (multiple of 256/128) when large so resident W
    # and output tiles fit v7x's 64 MiB VMEM and the megacore has a 2D space.
    if tn is None:
        tn = n_classes if n_classes <= 2048 else 512

    w_itemsize = jnp.dtype(compute_dtype).itemsize
    out_itemsize = jnp.dtype(out_dtype).itemsize

    cap = _vmem_capacity_bytes()
    budget = int(cap * 0.7)            # headroom for compiler scratch / spills
    if tm is None:
        tm = _choose_tm(M, C, tn, w_itemsize, out_itemsize, budget)

    grid_m = pl.cdiv(M, tm)
    grid_n = pl.cdiv(n_classes, tn)

    # --- One-shot, column-tiled W normalization (runs once, not per row tile).
    wn = pl.pallas_call(
        functools.partial(_normalize_w_kernel, s=float(s)),
        out_shape=jax.ShapeDtypeStruct((C, n_classes), compute_dtype),
        grid_spec=pltpu.PrefetchScalarGridSpec(
            num_scalar_prefetch=0,
            grid=(grid_n,),
            in_specs=[pl.BlockSpec((C, tn), lambda j: (0, j))],
            out_specs=pl.BlockSpec((C, tn), lambda j: (0, j)),
        ),
        compiler_params=pltpu.CompilerParams(
            dimension_semantics=("parallel",)),
    )(W)

    # --- Main tiled kernel.  No padding of x or the output.
    est = _tile_bytes(tm, C, tn, w_itemsize, out_itemsize)
    vmem_limit = int(min(cap * 0.8, max(2 * est, 32 * _MIB)))

    x2d = x.reshape(M, C)              # leading-dim collapse: no copy
    out2d = pl.pallas_call(
        functools.partial(_am_softmax_kernel, compute_dtype=compute_dtype),
        out_shape=jax.ShapeDtypeStruct((M, n_classes), out_dtype),
        grid_spec=pltpu.PrefetchScalarGridSpec(
            num_scalar_prefetch=0,
            # Class axis innermost: x block index is unchanged across it, so
            # each x row tile is fetched from HBM exactly once.
            grid=(grid_m, grid_n),
            in_specs=[
                pl.BlockSpec((tm, C), lambda i, j: (i, 0)),   # x row tile
                pl.BlockSpec((C, tn), lambda i, j: (0, j)),   # normalized W*s
            ],
            out_specs=pl.BlockSpec((tm, tn), lambda i, j: (i, j)),
        ),
        compiler_params=pltpu.CompilerParams(
            dimension_semantics=("parallel", "parallel"),
            vmem_limit_bytes=vmem_limit,
        ),
    )(x2d, wn)

    return out2d.reshape(B, N, n_classes)


def init_weight(key, in_feats, n_classes):
    # torch.nn.init.xavier_normal_(W, gain=1) on (in_feats, n_classes):
    # std = sqrt(2 / (in_feats + n_classes))
    std = (2.0 / (in_feats + n_classes)) ** 0.5
    return std * jax.random.normal(key, (in_feats, n_classes), dtype=jnp.float32)


def _reference(x, W, s):
    B, N, C = x.shape
    x2d = x.reshape(-1, C).astype(jnp.float32)
    xr = x2d / jnp.maximum(jnp.linalg.norm(x2d, axis=1, keepdims=True), 1e-12)
    wr = W / jnp.maximum(jnp.linalg.norm(W, axis=0, keepdims=True), 1e-12)
    costh = jnp.matmul(xr, wr, precision=lax.Precision.HIGHEST)
    return (costh * s).reshape(B, N, -1)


if __name__ == "__main__":
    key = jax.random.PRNGKey(0)
    kx, kw, kx2, kw2, kx3, kw3 = jax.random.split(key, 6)
    s = 30.0

    # Small shapes consistent with the module: batch=2, tokens=8, hidden=32.
    B, N, C = 2, 8, 32
    n_classes = 16
    x = jax.random.normal(kx, (B, N, C), dtype=jnp.float32)
    W = init_weight(kw, C, n_classes)
    ref = _reference(x, W, s)

    # Default path: f32 operands and f32 output (matches torch numerics).
    out = jax.block_until_ready(am_softmax_forward(x, W, s))
    assert out.shape == (B, N, n_classes)
    assert out.dtype == jnp.float32
    assert jnp.allclose(out, ref, atol=1e-3, rtol=1e-3)

    # Perf path: bf16 MXU operands + bf16 output (halves output HBM traffic).
    out_bf16 = jax.block_until_ready(
        am_softmax_forward(x, W, s,
                           compute_dtype=jnp.bfloat16, out_dtype=jnp.bfloat16))
    assert out_bf16.dtype == jnp.bfloat16
    assert jnp.allclose(out_bf16.astype(jnp.float32), ref, atol=0.3, rtol=2.5e-2)

    # Ragged case: B*N not a multiple of the row tile, n_classes not
    # 128-aligned -- handled entirely by partial blocks, no padding.
    B2, N2, C2, nc2 = 3, 50, 32, 10
    x2 = jax.random.normal(kx2, (B2, N2, C2), dtype=jnp.float32)
    W2 = init_weight(kw2, C2, nc2)
    out2 = jax.block_until_ready(am_softmax_forward(x2, W2, s))
    ref2 = _reference(x2, W2, s)
    assert out2.shape == (B2, N2, nc2)
    assert jnp.allclose(out2, ref2, atol=1e-3, rtol=1e-3)

    # Large class count: exercises the class-tiled 2D grid (tn=512) including
    # a partial last class block.
    B3, N3, C3, nc3 = 1, 8, 32, 2500
    x3 = jax.random.normal(kx3, (B3, N3, C3), dtype=jnp.float32)
    W3 = init_weight(kw3, C3, nc3)
    out3 = jax.block_until_ready(am_softmax_forward(x3, W3, s))
    ref3 = _reference(x3, W3, s)
    assert out3.shape == (B3, N3, nc3)
    assert jnp.allclose(out3, ref3, atol=1e-3, rtol=1e-3)

    print("KERNEL_OK")
</pallas_src>

<mosaic_0001>
module attributes {stable_mosaic.version = 11 : i64} {
  func.func @_normalize_w_kernel(%arg0: i32, %arg1: memref<32x16xf32, #tpu.memory_space<vmem>>, %arg2: memref<32x16xf32, #tpu.memory_space<vmem>>) attributes {dimension_semantics = [#tpu.dimension_semantics<parallel>], iteration_bounds = array<i64: 1>, scalar_prefetch = 0 : i64, scratch_operands = 0 : i64, tpu.core_type = #tpu.core_type<tc>, window_params = [{transform_indices = @transform_0, window_bounds = array<i64: 32, 16>}, {transform_indices = @transform_1, window_bounds = array<i64: 32, 16>}]} {
    %c0 = arith.constant 0 : index
    %c0_0 = arith.constant 0 : index
    %0 = vector.load %arg1[%c0, %c0_0] : memref<32x16xf32, #tpu.memory_space<vmem>>, vector<32x16xf32>
    %1 = arith.mulf %0, %0 : vector<32x16xf32>
    %cst = arith.constant dense<0.000000e+00> : vector<16xf32>
    %2 = vector.multi_reduction <add>, %1, %cst [0] : vector<32x16xf32> to vector<16xf32>
    %3 = vector.shape_cast %2 : vector<16xf32> to vector<1x16xf32>
    %cst_1 = arith.constant 1.000000e-24 : f32
    %4 = vector.broadcast %cst_1 : f32 to vector<1x16xf32>
    %5 = arith.maximumf %3, %4 : vector<1x16xf32>
    %6 = math.rsqrt %5 : vector<1x16xf32>
    %cst_2 = arith.constant 3.000000e+01 : f32
    %7 = vector.broadcast %cst_2 : f32 to vector<1x16xf32>
    %8 = arith.mulf %6, %7 : vector<1x16xf32>
    %9 = vector.broadcast %8 : vector<1x16xf32> to vector<32x16xf32>
    %10 = arith.mulf %0, %9 : vector<32x16xf32>
    %c0_3 = arith.constant 0 : index
    %c0_4 = arith.constant 0 : index
    %11 = vector.load %arg2[%c0_3, %c0_4] : memref<32x16xf32, #tpu.memory_space<vmem>>, vector<32x16xf32>
    tpu.vector_store %arg2[%c0_3, %c0_4], %10 {strides = array<i32>} : memref<32x16xf32, #tpu.memory_space<vmem>>, vector<32x16xf32>,
    return
  }
  func.func @transform_0(%arg0: i32) -> (i32, i32) {
    %c0_i32 = arith.constant 0 : i32
    %c0_i32_0 = arith.constant 0 : i32
    return %c0_i32, %arg0 : i32, i32
  }
  func.func @transform_1(%arg0: i32) -> (i32, i32) {
    %c0_i32 = arith.constant 0 : i32
    %c0_i32_0 = arith.constant 0 : i32
    return %c0_i32, %arg0 : i32, i32
  }
}

</mosaic_0001>

<llo_original>
// kernel: tpu_custom_call.1
$region0: #{tpu_custom_call.1}
  #allocation0 [shape = 'u32[]', space=smem, size = 0x4, offset = 0x4, fixed_abs, tag = 'smem constant byte address 0x4 - core index']
  #allocation1 [shape = 'u32[144,128]{1,0:T(1,128)}', space=vmem, size = 0x12000, scoped, tag = 'internal scratch']
  %s0 = inlined_call_operand.vmem [shape: f32[32,16], index: 0, kind: input, shape index: {}]
  %s1 = inlined_call_operand.vmem [shape: f32[32,16], index: 1, kind: output, shape index: {}]
  %s2 = sld [smem:[#allocation0]]
  $region14: #{tpu_custom_call.1} parent=0
    _
  %s4 = ssub.s32 1, %s2
  %s5 = scalar_select 0, %s4, %s2
  // Predicated region
  $region2: #{tpu_custom_call.1} parent=0 // pred_check
    _
  $region3: #{tpu_custom_call.1} parent=0 // pred_check_branch
    %7 = sbr.rel (0) target = $region5
  $region4: #{tpu_custom_call.1} parent=0 // pred_region
    _
  $region5: #{tpu_custom_call.1} parent=0 // pred_fallthru
    _
  %v8 = vld [vmem:[%s0] sm:$0xff]
  %v9 = vld [vmem:[%s0 + $0x8] sm:$0xff]
  %v10 = vld [vmem:[%s0 + $0x10] sm:$0xff]
  %v11 = vld [vmem:[%s0 + $0x18] sm:$0xff]
  %v12 = vmul.f32 %v8, %v8
  %v13 = vmul.f32 %v9, %v9
  %v14 = vmul.f32 %v10, %v10
  %v15 = vmul.f32 %v11, %v11
  %vm16 = vcmask 130048
  %v17 = vsel %vm16, %v12, 0.0
  %v18 = vsel %vm16, %v13, 0.0
  %v19 = vadd.f32 %v17, %v18
  %v20 = vsel %vm16, %v14, 0.0
  %v21 = vadd.f32 %v19, %v20
  %v22 = vsel %vm16, %v15, 0.0
  %v23 = vadd.f32 %v21, %v22
  %v24 = vrot.slane %v23, 4
  %v25 = vadd.f32 %v23, %v24
  %v26 = vrot.slane %v25, 2
  %v27 = vadd.f32 %v25, %v26
  %v28 = vrot.slane %v27, 1
  %v29 = vadd.f32 %v27, %v28
  %v30 = vmax.f32 %v29, 1e-24
  %v31 = vrsqrt.pop %v30
  %v32 = vmul.f32 %v31, 30.0
  %v33 = vmul.f32 %v8, %v32
  %v34 = vmul.f32 %v9, %v32
  %v35 = vmul.f32 %v10, %v32
  %v36 = vmul.f32 %v11, %v32
  %37 = vst.msk [vmem:[%s1] sm:$0xff] %vm16, %v33
  %38 = vst.msk [vmem:[%s1 + $0x8] sm:$0xff] %vm16, %v34
  %39 = vst.msk [vmem:[%s1 + $0x10] sm:$0xff] %vm16, %v35
  %40 = vst.msk [vmem:[%s1 + $0x18] sm:$0xff] %vm16, %v36
  // Predicated region
  $region6: #{tpu_custom_call.1} parent=0 // pred_check
    _
  $region7: #{tpu_custom_call.1} parent=0 // pred_check_branch
    %42 = sbr.rel (0) target = $region9
  $region8: #{tpu_custom_call.1} parent=0 // pred_region
    _
  $region9: #{tpu_custom_call.1} parent=0 // pred_fallthru
    _
  // Predicated region
  $region10: #{tpu_custom_call.1} parent=0 // pred_check
    _
  $region11: #{tpu_custom_call.1} parent=0 // pred_check_branch
    %44 = sbr.rel (0) target = $region13
  $region12: #{tpu_custom_call.1} parent=0 // pred_region
    _
  $region13: #{tpu_custom_call.1} parent=0 // pred_fallthru
    _

</llo_original>
